<compile_context>
chip_gen: v6e
topology: v6e:2x2x1
jax: 0.10.0
libtpu: 0.0.40
codegen_flags: <defaults>
</compile_context>

<pallas_src>
import math

import jax
import jax.numpy as jnp
from jax.experimental import pallas as pl
from jax.experimental.pallas import tpu as pltpu


def _head_kernel(x_ref, w_ref, b_ref, o_ref):
    # Max-pool over vertices in the *input* dtype (max is exact in bf16), then
    # upcast to f32 — avoids materializing an f32 copy of the whole block.
    pooled = jnp.max(x_ref[...], axis=1).astype(jnp.float32)      # (RB, D)

    # nn.LayerNorm(D): biased variance, eps=1e-5.  gamma/beta are folded into
    # w_ref/b_ref by the wrapper, so only the normalization happens here.
    mean = jnp.mean(pooled, axis=-1, keepdims=True)
    centered = pooled - mean
    var = jnp.mean(centered * centered, axis=-1, keepdims=True)
    xn = centered * jax.lax.rsqrt(var + 1e-5)                     # (RB, D)

    # dropout is identity in eval mode.
    # head: one (RB, D) x (D, C) matmul; epilogue is hidden under input DMA.
    logits = jnp.dot(xn, w_ref[...], preferred_element_type=jnp.float32)
    o_ref[...] = (logits + b_ref[...]).astype(o_ref.dtype)


def _pick_row_block(rows, v, d, itemsize, per_buffer_bytes):
    """Rows of (V, D) per grid step: a multiple of 8 (sublane aligned), sized
    to the per-buffer VMEM budget, with >=2 grid steps when possible and a
    best-effort even step count (v7x shards the parallel axis over 2 TCs)."""
    per_row = max(1, v * d * itemsize)
    budget_rb = max(8, (per_buffer_bytes // per_row) // 8 * 8)
    rows_padded = pl.cdiv(rows, 8) * 8
    rb = min(budget_rb, rows_padded)
    if rows_padded > 8:
        # Keep at least 2 grid steps so both v7x TCs get work / pipeline overlaps.
        rb = min(rb, max(8, (rows_padded // 2) // 8 * 8))
        steps = pl.cdiv(rows_padded, rb)
        if steps % 2 == 1 and rows_padded > rb:
            # Best-effort: shrink the block so the step count becomes even.
            rb_even = pl.cdiv(pl.cdiv(rows_padded, steps + 1), 8) * 8
            if rb_even >= 8 and pl.cdiv(rows_padded, rb_even) % 2 == 0:
                rb = rb_even
    return int(rb)


def graph_encoder_mlp_head(x, gamma, beta, w, b, *, row_block=None,
                           vmem_budget_bytes=32 << 20):
    """x: (N, T, V, D); gamma/beta: (1, D); w: (D, C); b: (1, C) -> (N, T, C).

    vmem_budget_bytes is the target for the double-buffered x block
    (default 32 MiB total = 16 MiB per buffer).  The explicit vmem_limit_bytes
    below is derived from the actual block sizes + headroom and stays safely
    inside v7x's 64 MiB physical VMEM (v5e/v6e have 128 MiB).
    """
    N, T, V, D = x.shape
    C = w.shape[1]

    # Fold LayerNorm affine into the head:  (xn*g + be) @ W + b
    #   == xn @ (diag(g) @ W) + (be @ W + b)
    w_eff = (gamma.reshape(D, 1).astype(jnp.float32)
             * w.astype(jnp.float32))                              # (D, C)
    b_eff = (beta.reshape(1, D).astype(jnp.float32) @ w.astype(jnp.float32)
             + b.reshape(1, C).astype(jnp.float32))                # (1, C)

    # Flatten batch*time into independent rows; pooling/LayerNorm/head are all
    # per-(n, t) row, so blocking over rows in multiples of 8 works for any N, T.
    R = N * T
    xr = x.reshape(R, V, D)                                        # free (row-major)

    in_itemsize = jnp.dtype(x.dtype).itemsize
    out_dtype = jnp.float32 if x.dtype == jnp.bfloat16 else x.dtype
    out_itemsize = jnp.dtype(out_dtype).itemsize

    if row_block is None:
        row_block = _pick_row_block(R, V, D, in_itemsize, vmem_budget_bytes // 2)
    RB = int(row_block)
    assert RB % 8 == 0, "row_block must be a multiple of 8 (sublane alignment)"
    grid = (pl.cdiv(R, RB),)

    # Explicit scoped-VMEM limit: 2x input block + 2x output block + in-kernel
    # f32 intermediates (pooled/centered/xn/logits) + fixed headroom.
    x_block_bytes = RB * V * D * in_itemsize
    out_block_bytes = RB * C * out_itemsize
    interm_bytes = 4 * RB * D * 4
    vmem_limit = int(2 * x_block_bytes + 2 * out_block_bytes + interm_bytes
                     + (4 << 20))
    vmem_limit = max(16 << 20, min(vmem_limit, 112 << 20))

    out = pl.pallas_call(
        _head_kernel,
        out_shape=jax.ShapeDtypeStruct((R, C), out_dtype),
        grid=grid,
        in_specs=[
            pl.BlockSpec((RB, V, D), lambda r: (r, 0, 0)),
            pl.BlockSpec((D, C), lambda r: (0, 0)),
            pl.BlockSpec((1, C), lambda r: (0, 0)),
        ],
        out_specs=pl.BlockSpec((RB, C), lambda r: (r, 0)),
        compiler_params=pltpu.CompilerParams(
            dimension_semantics=("parallel",),
            vmem_limit_bytes=vmem_limit),
    )(xr, w_eff, b_eff)
    return out.reshape(N, T, C)


def _reference_head(x, gamma, beta, w, b):
    """Pure-JAX reference: pool -> LayerNorm(gamma,beta) -> Linear."""
    pooled = jnp.max(x.astype(jnp.float32), axis=2)
    mu = pooled.mean(-1, keepdims=True)
    var = ((pooled - mu) ** 2).mean(-1, keepdims=True)
    y = ((pooled - mu) / jnp.sqrt(var + 1e-5)) * gamma.reshape(-1) + beta.reshape(-1)
    return y @ w + b.reshape(-1)


if __name__ == "__main__":
    # Small shapes consistent with the forward: N batch, T = n_hist,
    # V = num_nodes, D = encoder_embed_dim, C = pred_num_classes.
    N, T, V, D, C = 4, 8, 16, 128, 3

    key = jax.random.PRNGKey(0)
    kx, kw1, kg, kb, kw2, kb2, kx2 = jax.random.split(key, 7)

    # Stand-in for the Graphormer encoder output reshaped to (N, T, V, D).
    x = jax.random.normal(kx, (N, T, V, D), dtype=jnp.float32)

    # --- Check 1: module-style init (per _init_weights / GraphEncoderMLP) ---
    # self.norm = nn.LayerNorm(D): weight=1, bias=0.
    gamma0 = jnp.ones((1, D), jnp.float32)
    beta0 = jnp.zeros((1, D), jnp.float32)
    # self.head = nn.Linear(D, C): weight ~ N(0, 2e-5), bias = log(1/C).
    w0 = (jax.random.normal(kw1, (C, D), dtype=jnp.float32) * 2e-5).T  # (D, C)
    b0 = jnp.full((1, C), math.log(1.0 / C), dtype=jnp.float32)

    out0 = jax.block_until_ready(graph_encoder_mlp_head(x, gamma0, beta0, w0, b0))
    ref0 = _reference_head(x, gamma0, beta0, w0, b0)
    assert out0.shape == (N, T, C)
    assert jnp.allclose(out0, ref0, atol=1e-5, rtol=1e-5)

    # --- Check 2: O(1)-scale parameters so the matmul + gamma/beta folding
    # are actually exercised (not hidden under the tolerance). ---
    gamma1 = 1.0 + 0.1 * jax.random.normal(kg, (1, D), dtype=jnp.float32)
    beta1 = 0.1 * jax.random.normal(kb, (1, D), dtype=jnp.float32)
    w1 = jax.random.normal(kw2, (D, C), dtype=jnp.float32)
    b1 = jax.random.normal(kb2, (1, C), dtype=jnp.float32)

    out1 = jax.block_until_ready(graph_encoder_mlp_head(x, gamma1, beta1, w1, b1))
    ref1 = _reference_head(x, gamma1, beta1, w1, b1)
    assert jnp.allclose(out1, ref1, atol=1e-3, rtol=1e-4)

    # --- Check 3: awkward batch/time (rows = N*T = 15, not a multiple of the
    # 8-row block) exercises the cdiv grid / partial trailing block path. ---
    x_odd = jax.random.normal(kx2, (3, 5, V, D), dtype=jnp.float32)
    out2 = jax.block_until_ready(graph_encoder_mlp_head(x_odd, gamma1, beta1, w1, b1))
    ref2 = _reference_head(x_odd, gamma1, beta1, w1, b1)
    assert out2.shape == (3, 5, C)
    assert jnp.allclose(out2, ref2, atol=1e-3, rtol=1e-4)

    # --- Check 4: bf16 encoder output (halves HBM-read bytes; pooling in bf16
    # is exact, subsequent math runs in f32 inside the kernel). ---
    xb = x.astype(jnp.bfloat16)
    out3 = jax.block_until_ready(graph_encoder_mlp_head(xb, gamma1, beta1, w1, b1))
    ref3 = _reference_head(xb, gamma1, beta1, w1, b1)
    assert out3.dtype == jnp.float32
    assert jnp.allclose(out3, ref3, atol=1e-2, rtol=1e-3)

    print("KERNEL_OK")
</pallas_src>

<mosaic_0001>
module attributes {stable_mosaic.version = 11 : i64} {
  func.func @_head_kernel(%arg0: i32, %arg1: memref<16x16x128xf32, #tpu.memory_space<vmem>>, %arg2: memref<128x3xf32, #tpu.memory_space<vmem>>, %arg3: memref<1x3xf32, #tpu.memory_space<vmem>>, %arg4: memref<16x3xf32, #tpu.memory_space<vmem>>) attributes {dimension_semantics = [#tpu.dimension_semantics<parallel>], iteration_bounds = array<i64: 2>, scalar_prefetch = 0 : i64, scratch_operands = 0 : i64, tpu.core_type = #tpu.core_type<tc>, window_params = [{transform_indices = @transform_0, window_bounds = array<i64: 16, 16, 128>}, {pipeline_mode = #tpu.pipeline_mode<synchronous>, transform_indices = @transform_1, window_bounds = array<i64: 128, 3>}, {pipeline_mode = #tpu.pipeline_mode<synchronous>, transform_indices = @transform_2, window_bounds = array<i64: 1, 3>}, {transform_indices = @transform_3, window_bounds = array<i64: 16, 3>}]} {
    %c0 = arith.constant 0 : index
    %c0_0 = arith.constant 0 : index
    %c0_1 = arith.constant 0 : index
    %0 = vector.load %arg1[%c0, %c0_0, %c0_1] : memref<16x16x128xf32, #tpu.memory_space<vmem>>, vector<16x16x128xf32>
    %cst = arith.constant dense<0xFF800000> : vector<16x128xf32>
    %1 = vector.multi_reduction <maximumf>, %0, %cst [1] : vector<16x16x128xf32> to vector<16x128xf32>
    %cst_2 = arith.constant dense<0.000000e+00> : vector<16xf32>
    %2 = vector.multi_reduction <add>, %1, %cst_2 [1] : vector<16x128xf32> to vector<16xf32>
    %3 = vector.shape_cast %2 : vector<16xf32> to vector<16x1xf32>
    %cst_3 = arith.constant 1.280000e+02 : f32
    %4 = vector.broadcast %cst_3 : f32 to vector<16x1xf32>
    %5 = arith.divf %3, %4 : vector<16x1xf32>
    %6 = vector.broadcast %5 : vector<16x1xf32> to vector<16x128xf32>
    %7 = arith.subf %1, %6 : vector<16x128xf32>
    %8 = arith.mulf %7, %7 : vector<16x128xf32>
    %cst_4 = arith.constant dense<0.000000e+00> : vector<16xf32>
    %9 = vector.multi_reduction <add>, %8, %cst_4 [1] : vector<16x128xf32> to vector<16xf32>
    %10 = vector.shape_cast %9 : vector<16xf32> to vector<16x1xf32>
    %cst_5 = arith.constant 1.280000e+02 : f32
    %11 = vector.broadcast %cst_5 : f32 to vector<16x1xf32>
    %12 = arith.divf %10, %11 : vector<16x1xf32>
    %cst_6 = arith.constant 9.99999974E-6 : f32
    %13 = vector.broadcast %cst_6 : f32 to vector<16x1xf32>
    %14 = arith.addf %12, %13 : vector<16x1xf32>
    %15 = math.rsqrt %14 : vector<16x1xf32>
    %16 = vector.broadcast %15 : vector<16x1xf32> to vector<16x128xf32>
    %17 = arith.mulf %7, %16 : vector<16x128xf32>
    %c0_7 = arith.constant 0 : index
    %c0_8 = arith.constant 0 : index
    %18 = vector.load %arg2[%c0_7, %c0_8] : memref<128x3xf32, #tpu.memory_space<vmem>>, vector<128x3xf32>
    %cst_9 = arith.constant dense<0.000000e+00> : vector<16x3xf32>
    %19 = tpu.matmul %17, %18, %cst_9 {dimension_numbers = #tpu.dot_dimension_numbers<[1], [0], [0], [1], [0, 0, 1, 1], [], []>} : vector<16x128xf32>, vector<128x3xf32>, vector<16x3xf32> -> vector<16x3xf32>
    %c0_10 = arith.constant 0 : index
    %c0_11 = arith.constant 0 : index
    %20 = vector.load %arg3[%c0_10, %c0_11] : memref<1x3xf32, #tpu.memory_space<vmem>>, vector<1x3xf32>
    %21 = vector.broadcast %20 : vector<1x3xf32> to vector<16x3xf32>
    %22 = arith.addf %19, %21 : vector<16x3xf32>
    %c0_12 = arith.constant 0 : index
    %c0_13 = arith.constant 0 : index
    %23 = vector.load %arg4[%c0_12, %c0_13] : memref<16x3xf32, #tpu.memory_space<vmem>>, vector<16x3xf32>
    tpu.vector_store %arg4[%c0_12, %c0_13], %22 {strides = array<i32>} : memref<16x3xf32, #tpu.memory_space<vmem>>, vector<16x3xf32>,
    return
  }
  func.func @transform_0(%arg0: i32) -> (i32, i32, i32) {
    %c0_i32 = arith.constant 0 : i32
    %c0_i32_0 = arith.constant 0 : i32
    %c0_i32_1 = arith.constant 0 : i32
    return %arg0, %c0_i32, %c0_i32_0 : i32, i32, i32
  }
  func.func @transform_1(%arg0: i32) -> (i32, i32) {
    %c0_i32 = arith.constant 0 : i32
    %c0_i32_0 = arith.constant 0 : i32
    %c0_i32_1 = arith.constant 0 : i32
    return %c0_i32, %c0_i32_0 : i32, i32
  }
  func.func @transform_2(%arg0: i32) -> (i32, i32) {
    %c0_i32 = arith.constant 0 : i32
    %c0_i32_0 = arith.constant 0 : i32
    %c0_i32_1 = arith.constant 0 : i32
    return %c0_i32, %c0_i32_0 : i32, i32
  }
  func.func @transform_3(%arg0: i32) -> (i32, i32) {
    %c0_i32 = arith.constant 0 : i32
    %c0_i32_0 = arith.constant 0 : i32
    return %arg0, %c0_i32 : i32, i32
  }
}

</mosaic_0001>

<llo_original>
// kernel: tpu_custom_call.1
$region0: #{tpu_custom_call.1}
  #allocation0 [shape = 'u32[]', space=smem, size = 0x4, offset = 0x4, fixed_abs, tag = 'smem constant byte address 0x4 - core index']
  #allocation1 [shape = 'u32[144,128]{1,0:T(1,128)}', space=vmem, size = 0x12000, scoped, tag = 'internal scratch']
  %s0 = inlined_call_operand.hbm [shape: f32[32,16,128], index: 0, kind: input, shape index: {}]
  %s1 = inlined_call_operand.vmem [shape: f32[128,3], index: 1, kind: input, shape index: {}]
  %s2 = inlined_call_operand.vmem [shape: f32[1,3], index: 2, kind: input, shape index: {}]
  %s3 = inlined_call_operand.vmem [shape: f32[32,3], index: 3, kind: output, shape index: {}]
  %s4 = sld [smem:[#allocation0]]
  $region49: #{tpu_custom_call.1} parent=0
    _
  %s6 = ssub.s32 1, %s4
  %s7 = scalar_select 0, %s6, %s4
  $region1: #{tpu_custom_call.1} parent=0
    #allocation2 [shape = 'u8[262144]{0}', space=vmem, size = 0x40000, scoped, tag = 'input window, operand 0']
    #allocation3 [shape = 's32[2]{0}', space=sflag, size = 0x8, scoped, tag = 'scoped memory for tpu_custom_call.1']
    %8 = vsyncpa [#allocation3], 0
    %s9 = scalar_lea.sflag [#allocation3], 1
    %10 = vsyncpa %s9, 0
    loop: start=0, step=1, limit=4
    $region2: #{tpu_custom_call.1} parent=1 // loop_pre_header
      _
    $region3: #{tpu_custom_call.1} parent=1 // loop_header
      %s12 = sphi 0, %s16
      %p13 = scmp.ge.s32.totalorder %s12, 4
      %s22 = sphi 0, %s24
      %s25 = sphi 0, %s22
      %s26 = sphi 0, %s25
      %s42 = sphi 0, %s26
      %s46 = sphi 0, %s46
      %s48 = sphi 0, %s46
      %s49 = sphi 0, %s48
      %s63 = sphi 0, %s49
      %s67 = sphi 0, %s67
      %s69 = sphi 0, %s67
      %s70 = sphi 0, %s69
      %s84 = sphi 0, %s70
      %s90 = sphi 0, %s92
      %s93 = sphi 0, %s90
      %s94 = sphi 0, %s93
      %s110 = sphi 0, %s94
    $region4: #{tpu_custom_call.1} parent=1 // loop_header_branch
      %15 = sbr.rel (%p13) target = $region8
    $region5: #{tpu_custom_call.1} parent=1 // loop_body
      %s17 = ssub.s32 %s12, 1
      %s18 = ssub.s32 %s12, 2
      %s19 = sadd.s32 %s12, 1
      %s20 = ssub.s32 %s12, %s19
      %p21 = scmp.eq.s32.totalorder %s20, 0
      %s23 = sadd.s32 %s22, 1
      %s24 = scalar_select %p21, %s22, %s23
      %p27 = pneg %p21
      %p28 = scmp.eq.s32.totalorder %s12, 1
      %p29 = por %p27, %p28
      %p30 = scmp.ne.s32.totalorder %s22, %s25
      %p31 = scmp.eq.s32.totalorder %s12, 0
      %p32 = por %p30, %p31
      %p33 = scmp.ne.s32.totalorder %s22, %s25
      %p34 = scmp.eq.s32.totalorder %s17, 1
      %p35 = por %p33, %p34
      %p36 = scmp.ne.s32.totalorder %s25, %s26
      %p37 = scmp.eq.s32.totalorder %s17, 0
      %p38 = por %p36, %p37
      %p39 = scmp.ne.s32.totalorder %s25, %s26
      %p40 = scmp.eq.s32.totalorder %s18, 1
      %p41 = por %p39, %p40
      %p43 = scmp.ne.s32.totalorder %s26, %s42
      %p44 = scmp.eq.s32.totalorder %s18, 0
      %p45 = por %p43, %p44
      %s47 = sadd.s32 %s46, 1
      %p50 = scmp.eq.s32.totalorder %s12, 1
      %p51 = scmp.ne.s32.totalorder %s46, %s48
      %p52 = scmp.eq.s32.totalorder %s12, 0
      %p53 = por %p51, %p52
      %p54 = scmp.ne.s32.totalorder %s46, %s48
      %p55 = scmp.eq.s32.totalorder %s17, 1
      %p56 = por %p54, %p55
      %p57 = scmp.ne.s32.totalorder %s48, %s49
      %p58 = scmp.eq.s32.totalorder %s17, 0
      %p59 = por %p57, %p58
      %p60 = scmp.ne.s32.totalorder %s48, %s49
      %p61 = scmp.eq.s32.totalorder %s18, 1
      %p62 = por %p60, %p61
      %p64 = scmp.ne.s32.totalorder %s49, %s63
      %p65 = scmp.eq.s32.totalorder %s18, 0
      %p66 = por %p64, %p65
      %s68 = sadd.s32 %s67, 1
      %p71 = scmp.eq.s32.totalorder %s12, 1
      %p72 = scmp.ne.s32.totalorder %s67, %s69
      %p73 = scmp.eq.s32.totalorder %s12, 0
      %p74 = por %p72, %p73
      %p75 = scmp.ne.s32.totalorder %s67, %s69
      %p76 = scmp.eq.s32.totalorder %s17, 1
      %p77 = por %p75, %p76
      %p78 = scmp.ne.s32.totalorder %s69, %s70
      %p79 = scmp.eq.s32.totalorder %s17, 0
      %p80 = por %p78, %p79
      %p81 = scmp.ne.s32.totalorder %s69, %s70
      %p82 = scmp.eq.s32.totalorder %s18, 1
      %p83 = por %p81, %p82
      %p85 = scmp.ne.s32.totalorder %s70, %s84
      %p86 = scmp.eq.s32.totalorder %s18, 0
      %p87 = por %p85, %p86
      %s88 = ssub.s32 %s12, %s19
      %p89 = scmp.eq.s32.totalorder %s88, 0
      %s91 = sadd.s32 %s90, 1
      %s92 = scalar_select %p89, %s90, %s91
      %p95 = pneg %p89
      %p96 = scmp.eq.s32.totalorder %s12, 1
      %p97 = por %p95, %p96
      %p98 = scmp.ne.s32.totalorder %s90, %s93
      %p99 = scmp.eq.s32.totalorder %s12, 0
      %p100 = por %p98, %p99
      %p101 = scmp.ne.s32.totalorder %s90, %s93
      %p102 = scmp.eq.s32.totalorder %s17, 1
      %p103 = por %p101, %p102
      %p104 = scmp.ne.s32.totalorder %s93, %s94
      %p105 = scmp.eq.s32.totalorder %s17, 0
      %p106 = por %p104, %p105
      %p107 = scmp.ne.s32.totalorder %s93, %s94
      %p108 = scmp.eq.s32.totalorder %s18, 1
      %p109 = por %p107, %p108
      %p111 = scmp.ne.s32.totalorder %s94, %s110
      %p112 = scmp.eq.s32.totalorder %s18, 0
      %p113 = por %p111, %p112
      %p114 = scmp.le.s32.totalorder 1, %s12
      %p115 = scmp.lt.s32.totalorder %s12, 3
      %p116 = pnand %p114, %p115
      %p117 = pneg %p116
      // Predicated region
      $region9: #{tpu_custom_call.1} parent=5 // pred_check
        _
      $region10: #{tpu_custom_call.1} parent=5 // pred_check_branch
        %119 = sbr.rel (%p116) target = $region12
      $region11: #{tpu_custom_call.1} parent=5 // pred_region
        %s120 = ssub.s32 %s12, 1
        // Predicated region
        $region13: #{tpu_custom_call.1} parent=11 // pred_check
          %p121 = pneg %p59
        $region14: #{tpu_custom_call.1} parent=11 // pred_check_branch
          %123 = sbr.rel (%p121) target = $region16
        $region15: #{tpu_custom_call.1} parent=11 // pred_region
          _
        $region16: #{tpu_custom_call.1} parent=11 // pred_fallthru
          _
        // Predicated region
        $region17: #{tpu_custom_call.1} parent=11 // pred_check
          %p124 = pneg %p80
        $region18: #{tpu_custom_call.1} parent=11 // pred_check_branch
          %126 = sbr.rel (%p124) target = $region20
        $region19: #{tpu_custom_call.1} parent=11 // pred_region
          _
        $region20: #{tpu_custom_call.1} parent=11 // pred_fallthru
          _
      $region12: #{tpu_custom_call.1} parent=5 // pred_fallthru
        _
      %p127 = scmp.lt.s32.totalorder %s12, 2
      // Predicated region
      $region21: #{tpu_custom_call.1} parent=5 // pred_check
        %p128 = pneg %p127
      $region22: #{tpu_custom_call.1} parent=5 // pred_check_branch
        %130 = sbr.rel (%p128) target = $region24
      $region23: #{tpu_custom_call.1} parent=5 // pred_region
        // Predicated region
        $region25: #{tpu_custom_call.1} parent=23 // pred_check
          %p131 = pneg %p32
        $region26: #{tpu_custom_call.1} parent=23 // pred_check_branch
          %133 = sbr.rel (%p131) target = $region28
        $region27: #{tpu_custom_call.1} parent=23 // pred_region
          %s134 = sand.u32 %s22, 1
          %s135 = scalar_lea.sflag [#allocation3], %s134
          %s136 = sand.u32 %s22, 1
          %s137 = smul.addr %s136, 256
          %s138 = scalar_lea.vmem [#allocation2], %s137
          %s139 = smul.u32 16, %s12
          %s141 = ssub.s32 4096, 4096
          %142 = vsyncadd %s135, %s141
          %s143 = smul.addr %s139, 2
          %s144 = smul.addr %s143, 128
          %s145 = scalar_lea.hbm %s0, %s144
          %s146 = sshll.u32 %s138, 4
          %s147 = int_to_ptr.vmem [resolvable:$true] %s146
          %152 = dma.hbm_to_vmem [thread:$0]  %s145, 4096, %s147, %s135, 128, 128, 8
        $region28: #{tpu_custom_call.1} parent=23 // pred_fallthru
          _
      $region24: #{tpu_custom_call.1} parent=5 // pred_fallthru
        _
      %p153 = scmp.le.s32.totalorder 1, %s12
      %p154 = scmp.lt.s32.totalorder %s12, 3
      %p155 = pnand %p153, %p154
      %p156 = pneg %p155
      // Predicated region
      $region29: #{tpu_custom_call.1} parent=5 // pred_check
        _
      $region30: #{tpu_custom_call.1} parent=5 // pred_check_branch
        %158 = sbr.rel (%p155) target = $region32
      $region31: #{tpu_custom_call.1} parent=5 // pred_region
        %s159 = ssub.s32 %s12, 1
        %s160 = sand.u32 %s25, 1
        %s161 = scalar_lea.sflag [#allocation3], %s160
        %s162 = sand.u32 %s25, 1
        %s163 = smul.addr %s162, 256
        %s164 = scalar_lea.vmem [#allocation2], %s163
        // Predicated region
        $region33: #{tpu_custom_call.1} parent=31 // pred_check
          %p165 = pneg %p38
        $region34: #{tpu_custom_call.1} parent=31 // pred_check_branch
          %167 = sbr.rel (%p165) target = $region36
        $region35: #{tpu_custom_call.1} parent=31 // pred_region
          %168 = dma.done %s161, 4096
        $region36: #{tpu_custom_call.1} parent=31 // pred_fallthru
          _
        %s169 = sand.u32 %s25, 1
        %s170 = scalar_lea.sflag [#allocation3], %s169
        %s171 = sand.u32 %s25, 1
        %s172 = smul.addr %s171, 256
        %s173 = scalar_lea.vmem [#allocation2], %s172
        %p174 = pneg %p38
        %p175 = pneg %p35
        %p176 = pneg %p59
        %p177 = pneg %p56
        %p178 = pneg %p80
        %p179 = pneg %p77
        %p180 = pneg %p106
        %p181 = pneg %p103
        %s182 = smul.u32 2, %s17
        %p183 = scmp.lt.s32.totalorder %s182, 3
        %s184 = scalar_select %p183, %s182, 3
        %s185 = smul.addr %s184, 8
        %s186 = scalar_lea.vmem %s3, %s185
        %s187 = smul.u32 16, %s17
        %s188 = smul.u32 2, %s17
        %p189 = scmp.lt.s32.totalorder %s188, 3
        %s190 = scalar_select %p189, %s188, 3
        %s191 = smul.addr %s190, 8
        %s192 = scalar_lea.vmem %s3, %s191
        %s193 = smul.u32 2, %s17
        %v194 = vld [vmem:[%s164] sm:$0xff]
        %v195 = vld [vmem:[%s164 + $0x8] sm:$0xff]
        %v196 = vld [vmem:[%s164 + $0x10] sm:$0xff]
        %v197 = vld [vmem:[%s164 + $0x18] sm:$0xff]
        %v198 = vld [vmem:[%s164 + $0x20] sm:$0xff]
        %v199 = vld [vmem:[%s164 + $0x28] sm:$0xff]
        %v200 = vld [vmem:[%s164 + $0x30] sm:$0xff]
        %v201 = vld [vmem:[%s164 + $0x38] sm:$0xff]
        %v202 = vld [vmem:[%s164 + $0x40] sm:$0xff]
        %v203 = vld [vmem:[%s164 + $0x48] sm:$0xff]
        %v204 = vld [vmem:[%s164 + $0x50] sm:$0xff]
        %v205 = vld [vmem:[%s164 + $0x58] sm:$0xff]
        %v206 = vld [vmem:[%s164 + $0x60] sm:$0xff]
        %v207 = vld [vmem:[%s164 + $0x68] sm:$0xff]
        %v208 = vld [vmem:[%s164 + $0x70] sm:$0xff]
        %v209 = vld [vmem:[%s164 + $0x78] sm:$0xff]
        %v210 = vld [vmem:[%s164 + $0x80] sm:$0xff]
        %v211 = vld [vmem:[%s164 + $0x88] sm:$0xff]
        %v212 = vld [vmem:[%s164 + $0x90] sm:$0xff]
        %v213 = vld [vmem:[%s164 + $0x98] sm:$0xff]
        %v214 = vld [vmem:[%s164 + $0xa0] sm:$0xff]
        %v215 = vld [vmem:[%s164 + $0xa8] sm:$0xff]
        %v216 = vld [vmem:[%s164 + $0xb0] sm:$0xff]
        %v217 = vld [vmem:[%s164 + $0xb8] sm:$0xff]
        %v218 = vld [vmem:[%s164 + $0xc0] sm:$0xff]
        %v219 = vld [vmem:[%s164 + $0xc8] sm:$0xff]
        %v220 = vld [vmem:[%s164 + $0xd0] sm:$0xff]
        %v221 = vld [vmem:[%s164 + $0xd8] sm:$0xff]
        %v222 = vld [vmem:[%s164 + $0xe0] sm:$0xff]
        %v223 = vld [vmem:[%s164 + $0xe8] sm:$0xff]
        %v224 = vld [vmem:[%s164 + $0xf0] sm:$0xff]
        %v225 = vld [vmem:[%s164 + $0xf8] sm:$0xff]
        %v226 = vmax.f32 %v194, %v195
        %v227 = vrot.slane %v226, 4
        %v228 = vmax.f32 %v226, %v227
        %v229 = vrot.slane %v228, 2
        %v230 = vmax.f32 %v228, %v229
        %v231 = vrot.slane %v230, 1
        %v232 = vmax.f32 %v230, %v231
        %v233 = vmax.f32 %v196, %v197
        %v234 = vrot.slane %v233, 4
        %v235 = vmax.f32 %v233, %v234
        %v236 = vrot.slane %v235, 2
        %v237 = vmax.f32 %v235, %v236
        %v238 = vrot.slane %v237, 1
        %v239 = vmax.f32 %v237, %v238
        %v240 = vmax.f32 %v198, %v199
        %v241 = vrot.slane %v240, 4
        %v242 = vmax.f32 %v240, %v241
        %v243 = vrot.slane %v242, 2
        %v244 = vmax.f32 %v242, %v243
        %v245 = vrot.slane %v244, 1
        %v246 = vmax.f32 %v244, %v245
        %v247 = vmax.f32 %v200, %v201
        %v248 = vrot.slane %v247, 4
        %v249 = vmax.f32 %v247, %v248
        %v250 = vrot.slane %v249, 2
        %v251 = vmax.f32 %v249, %v250
        %v252 = vrot.slane %v251, 1
        %v253 = vmax.f32 %v251, %v252
        %v254 = vmax.f32 %v202, %v203
        %v255 = vrot.slane %v254, 4
        %v256 = vmax.f32 %v254, %v255
        %v257 = vrot.slane %v256, 2
        %v258 = vmax.f32 %v256, %v257
        %v259 = vrot.slane %v258, 1
        %v260 = vmax.f32 %v258, %v259
        %v261 = vmax.f32 %v204, %v205
        %v262 = vrot.slane %v261, 4
        %v263 = vmax.f32 %v261, %v262
        %v264 = vrot.slane %v263, 2
        %v265 = vmax.f32 %v263, %v264
        %v266 = vrot.slane %v265, 1
        %v267 = vmax.f32 %v265, %v266
        %v268 = vmax.f32 %v206, %v207
        %v269 = vrot.slane %v268, 4
        %v270 = vmax.f32 %v268, %v269
        %v271 = vrot.slane %v270, 2
        %v272 = vmax.f32 %v270, %v271
        %v273 = vrot.slane %v272, 1
        %v274 = vmax.f32 %v272, %v273
        %v275 = vmax.f32 %v208, %v209
        %v276 = vrot.slane %v275, 4
        %v277 = vmax.f32 %v275, %v276
        %v278 = vrot.slane %v277, 2
        %v279 = vmax.f32 %v277, %v278
        %v280 = vrot.slane %v279, 1
        %v281 = vmax.f32 %v279, %v280
        %v282 = vmax.f32 %v210, %v211
        %v283 = vrot.slane %v282, 4
        %v284 = vmax.f32 %v282, %v283
        %v285 = vrot.slane %v284, 2
        %v286 = vmax.f32 %v284, %v285
        %v287 = vrot.slane %v286, 1
        %v288 = vmax.f32 %v286, %v287
        %v289 = vmax.f32 %v212, %v213
        %v290 = vrot.slane %v289, 4
        %v291 = vmax.f32 %v289, %v290
        %v292 = vrot.slane %v291, 2
        %v293 = vmax.f32 %v291, %v292
        %v294 = vrot.slane %v293, 1
        %v295 = vmax.f32 %v293, %v294
        %v296 = vmax.f32 %v214, %v215
        %v297 = vrot.slane %v296, 4
        %v298 = vmax.f32 %v296, %v297
        %v299 = vrot.slane %v298, 2
        %v300 = vmax.f32 %v298, %v299
        %v301 = vrot.slane %v300, 1
        %v302 = vmax.f32 %v300, %v301
        %v303 = vmax.f32 %v216, %v217
        %v304 = vrot.slane %v303, 4
        %v305 = vmax.f32 %v303, %v304
        %v306 = vrot.slane %v305, 2
        %v307 = vmax.f32 %v305, %v306
        %v308 = vrot.slane %v307, 1
        %v309 = vmax.f32 %v307, %v308
        %v310 = vmax.f32 %v218, %v219
        %v311 = vrot.slane %v310, 4
        %v312 = vmax.f32 %v310, %v311
        %v313 = vrot.slane %v312, 2
        %v314 = vmax.f32 %v312, %v313
        %v315 = vrot.slane %v314, 1
        %v316 = vmax.f32 %v314, %v315
        %v317 = vmax.f32 %v220, %v221
        %v318 = vrot.slane %v317, 4
        %v319 = vmax.f32 %v317, %v318
        %v320 = vrot.slane %v319, 2
        %v321 = vmax.f32 %v319, %v320
        %v322 = vrot.slane %v321, 1
        %v323 = vmax.f32 %v321, %v322
        %v324 = vmax.f32 %v222, %v223
        %v325 = vrot.slane %v324, 4
        %v326 = vmax.f32 %v324, %v325
        %v327 = vrot.slane %v326, 2
        %v328 = vmax.f32 %v326, %v327
        %v329 = vrot.slane %v328, 1
        %v330 = vmax.f32 %v328, %v329
        %v331 = vmax.f32 %v224, %v225
        %v332 = vrot.slane %v331, 4
        %v333 = vmax.f32 %v331, %v332
        %v334 = vrot.slane %v333, 2
        %v335 = vmax.f32 %v333, %v334
        %v336 = vrot.slane %v335, 1
        %v337 = vmax.f32 %v335, %v336
        %vm354 = vcmask 1041409
        %v355 = vsel %vm354, %v239, %v232
        %vm356 = vcmask 1042434
        %v357 = vsel %vm356, %v246, %v355
        %vm358 = vcmask 1043459
        %v359 = vsel %vm358, %v253, %v357
        %vm360 = vcmask 1044484
        %v361 = vsel %vm360, %v260, %v359
        %vm362 = vcmask 1045509
        %v363 = vsel %vm362, %v267, %v361
        %vm364 = vcmask 1046534
        %v365 = vsel %vm364, %v274, %v363
        %vm366 = vcmask 1047559
        %v367 = vsel %vm366, %v281, %v365
        %v368 = vsel %vm354, %v295, %v288
        %v369 = vsel %vm356, %v302, %v368
        %v370 = vsel %vm358, %v309, %v369
        %v371 = vsel %vm360, %v316, %v370
        %v372 = vsel %vm362, %v323, %v371
        %v373 = vsel %vm364, %v330, %v372
        %v374 = vsel %vm366, %v337, %v373
        %377 = vadd.xlane.f32.xlu0 %v367
        %v378 = vpop.xlane.xlu0 %377
        %379 = vadd.xlane.f32.xlu0 %v374
        %v380 = vpop.xlane.xlu0 %379
        %v381 = vrcp.pop 128.0
        %v382 = vmul.f32 %v378, %v381
        %v383 = vmul.f32 %v380, %v381
        %v386 = vrot.slane %v382, 1
        %v387 = vrot.slane %v382, 2
        %v388 = vrot.slane %v382, 3
        %v389 = vrot.slane %v382, 4
        %v390 = vrot.slane %v382, 5
        %v391 = vrot.slane %v382, 6
        %v392 = vrot.slane %v382, 7
        %v393 = vrot.slane %v383, 1
        %v394 = vrot.slane %v383, 2
        %v395 = vrot.slane %v383, 3
        %v396 = vrot.slane %v383, 4
        %v397 = vrot.slane %v383, 5
        %v398 = vrot.slane %v383, 6
        %v399 = vrot.slane %v383, 7
        %v416 = vsub.f32 %v232, %v382
        %v417 = vsub.f32 %v239, %v386
        %v418 = vsub.f32 %v246, %v387
        %v419 = vsub.f32 %v253, %v388
        %v420 = vsub.f32 %v260, %v389
        %v421 = vsub.f32 %v267, %v390
        %v422 = vsub.f32 %v274, %v391
        %v423 = vsub.f32 %v281, %v392
        %v424 = vsub.f32 %v288, %v383
        %v425 = vsub.f32 %v295, %v393
        %v426 = vsub.f32 %v302, %v394
        %v427 = vsub.f32 %v309, %v395
        %v428 = vsub.f32 %v316, %v396
        %v429 = vsub.f32 %v323, %v397
        %v430 = vsub.f32 %v330, %v398
        %v431 = vsub.f32 %v337, %v399
        %v432 = vmul.f32 %v416, %v416
        %v433 = vmul.f32 %v417, %v417
        %v434 = vmul.f32 %v418, %v418
        %v435 = vmul.f32 %v419, %v419
        %v436 = vmul.f32 %v420, %v420
        %v437 = vmul.f32 %v421, %v421
        %v438 = vmul.f32 %v422, %v422
        %v439 = vmul.f32 %v423, %v423
        %v440 = vmul.f32 %v424, %v424
        %v441 = vmul.f32 %v425, %v425
        %v442 = vmul.f32 %v426, %v426
        %v443 = vmul.f32 %v427, %v427
        %v444 = vmul.f32 %v428, %v428
        %v445 = vmul.f32 %v429, %v429
        %v446 = vmul.f32 %v430, %v430
        %v447 = vmul.f32 %v431, %v431
        %v464 = vrot.slane %v433, 7
        %v465 = vsel %vm354, %v464, %v432
        %v466 = vrot.slane %v434, 6
        %v467 = vsel %vm356, %v466, %v465
        %v468 = vrot.slane %v435, 5
        %v469 = vsel %vm358, %v468, %v467
        %v470 = vrot.slane %v436, 4
        %v471 = vsel %vm360, %v470, %v469
        %v472 = vrot.slane %v437, 3
        %v473 = vsel %vm362, %v472, %v471
        %v474 = vrot.slane %v438, 2
        %v475 = vsel %vm364, %v474, %v473
        %v476 = vrot.slane %v439, 1
        %v477 = vsel %vm366, %v476, %v475
        %v478 = vrot.slane %v441, 7
        %v479 = vsel %vm354, %v478, %v440
        %v480 = vrot.slane %v442, 6
        %v481 = vsel %vm356, %v480, %v479
        %v482 = vrot.slane %v443, 5
        %v483 = vsel %vm358, %v482, %v481
        %v484 = vrot.slane %v444, 4
        %v485 = vsel %vm360, %v484, %v483
        %v486 = vrot.slane %v445, 3
        %v487 = vsel %vm362, %v486, %v485
        %v488 = vrot.slane %v446, 2
        %v489 = vsel %vm364, %v488, %v487
        %v490 = vrot.slane %v447, 1
        %v491 = vsel %vm366, %v490, %v489
        %494 = vadd.xlane.f32.xlu0 %v477
        %v495 = vpop.xlane.xlu0 %494
        %496 = vadd.xlane.f32.xlu0 %v491
        %v497 = vpop.xlane.xlu0 %496
        %v498 = vmul.f32 %v495, %v381
        %v499 = vmul.f32 %v497, %v381
        %v500 = vadd.f32 %v498, 1e-05
        %v501 = vadd.f32 %v499, 1e-05
        %v502 = vrsqrt.pop %v500
        %v503 = vrsqrt.pop %v501
        %v506 = vrot.slane %v502, 1
        %v507 = vrot.slane %v502, 2
        %v508 = vrot.slane %v502, 3
        %v509 = vrot.slane %v502, 4
        %v510 = vrot.slane %v502, 5
        %v511 = vrot.slane %v502, 6
        %v512 = vrot.slane %v502, 7
        %v513 = vrot.slane %v503, 1
        %v514 = vrot.slane %v503, 2
        %v515 = vrot.slane %v503, 3
        %v516 = vrot.slane %v503, 4
        %v517 = vrot.slane %v503, 5
        %v518 = vrot.slane %v503, 6
        %v519 = vrot.slane %v503, 7
        %v536 = vmul.f32 %v416, %v502
        %v537 = vmul.f32 %v417, %v506
        %v538 = vmul.f32 %v418, %v507
        %v539 = vmul.f32 %v419, %v508
        %v540 = vmul.f32 %v420, %v509
        %v541 = vmul.f32 %v421, %v510
        %v542 = vmul.f32 %v422, %v511
        %v543 = vmul.f32 %v423, %v512
        %v544 = vmul.f32 %v424, %v503
        %v545 = vmul.f32 %v425, %v513
        %v546 = vmul.f32 %v426, %v514
        %v547 = vmul.f32 %v427, %v515
        %v548 = vmul.f32 %v428, %v516
        %v549 = vmul.f32 %v429, %v517
        %v550 = vmul.f32 %v430, %v518
        %v551 = vmul.f32 %v431, %v519
        %v552 = vld [vmem:[%s1] sm:$0xff]
        %v553 = vld [vmem:[%s1 + $0x8] sm:$0xff]
        %v554 = vld [vmem:[%s1 + $0x10] sm:$0xff]
        %v555 = vld [vmem:[%s1 + $0x18] sm:$0xff]
        %v556 = vld [vmem:[%s1 + $0x20] sm:$0xff]
        %v557 = vld [vmem:[%s1 + $0x28] sm:$0xff]
        %v558 = vld [vmem:[%s1 + $0x30] sm:$0xff]
        %v559 = vld [vmem:[%s1 + $0x38] sm:$0xff]
        %v560 = vld [vmem:[%s1 + $0x40] sm:$0xff]
        %v561 = vld [vmem:[%s1 + $0x48] sm:$0xff]
        %v562 = vld [vmem:[%s1 + $0x50] sm:$0xff]
        %v563 = vld [vmem:[%s1 + $0x58] sm:$0xff]
        %v564 = vld [vmem:[%s1 + $0x60] sm:$0xff]
        %v565 = vld [vmem:[%s1 + $0x68] sm:$0xff]
        %v566 = vld [vmem:[%s1 + $0x70] sm:$0xff]
        %v567 = vld [vmem:[%s1 + $0x78] sm:$0xff]
        %v568 = vld [vmem:[%s2] sm:$0x1]
        %v570 = vlaneseq
        %v571 = vshrl.u32 %v570, 7
        %v572 = vsub.s32 0, %v571
        %v573 = vrot.slane %v568, %v572
        %v591 = vrot.slane %v537, 7
        %v592 = vsel %vm354, %v591, %v536
        %v593 = vrot.slane %v538, 6
        %v594 = vsel %vm356, %v593, %v592
        %v595 = vrot.slane %v539, 5
        %v596 = vsel %vm358, %v595, %v594
        %v597 = vrot.slane %v540, 4
        %v598 = vsel %vm360, %v597, %v596
        %v599 = vrot.slane %v541, 3
        %v600 = vsel %vm362, %v599, %v598
        %v601 = vrot.slane %v542, 2
        %v602 = vsel %vm364, %v601, %v600
        %v603 = vrot.slane %v543, 1
        %v604 = vsel %vm366, %v603, %v602
        %v605 = vrot.slane %v545, 7
        %v606 = vsel %vm354, %v605, %v544
        %v607 = vrot.slane %v546, 6
        %v608 = vsel %vm356, %v607, %v606
        %v609 = vrot.slane %v547, 5
        %v610 = vsel %vm358, %v609, %v608
        %v611 = vrot.slane %v548, 4
        %v612 = vsel %vm360, %v611, %v610
        %v613 = vrot.slane %v549, 3
        %v614 = vsel %vm362, %v613, %v612
        %v615 = vrot.slane %v550, 2
        %v616 = vsel %vm364, %v615, %v614
        %v617 = vrot.slane %v551, 1
        %v618 = vsel %vm366, %v617, %v616
        %621 = vmatprep.subr.mxu0 0.0
        %622 = vmatpush1.msra.mxu0 %v567
        %623 = vmatprep.subr.mxu0 0.0
        %624 = vmatpush1.msra.mxu0 %v566
        %625 = vmatprep.subr.mxu0 0.0
        %626 = vmatpush1.msra.mxu0 %v565
        %627 = vmatprep.subr.mxu0 0.0
        %628 = vmatpush1.msra.mxu0 %v564
        %629 = vmatprep.subr.mxu0 0.0
        %630 = vmatpush1.msra.mxu0 %v563
        %631 = vmatprep.subr.mxu0 0.0
        %632 = vmatpush1.msra.mxu0 %v562
        %633 = vmatprep.subr.mxu0 0.0
        %634 = vmatpush1.msra.mxu0 %v561
        %635 = vmatprep.subr.mxu0 0.0
        %636 = vmatpush1.msra.mxu0 %v560
        %637 = vmatprep.subr.mxu0 0.0
        %638 = vmatpush1.msra.mxu0 %v559
        %639 = vmatprep.subr.mxu0 0.0
        %640 = vmatpush1.msra.mxu0 %v558
        %641 = vmatprep.subr.mxu0 0.0
        %642 = vmatpush1.msra.mxu0 %v557
        %643 = vmatprep.subr.mxu0 0.0
        %644 = vmatpush1.msra.mxu0 %v556
        %645 = vmatprep.subr.mxu0 0.0
        %646 = vmatpush1.msra.mxu0 %v555
        %647 = vmatprep.subr.mxu0 0.0
        %648 = vmatpush1.msra.mxu0 %v554
        %649 = vmatprep.subr.mxu0 0.0
        %650 = vmatpush1.msra.mxu0 %v553
        %651 = vmatprep.subr.mxu0 0.0
        %652 = vmatpush1.msra.mxu0 %v552
        %653 = vmatprep.subr.mxu0 0.0
        %654 = vmatpush2.msra.mxu0 0.0
        %655 = vmatprep.subr.mxu0 0.0
        %656 = vmatpush2.msra.mxu0 0.0
        %657 = vmatprep.subr.mxu0 0.0
        %658 = vmatpush2.msra.mxu0 0.0
        %659 = vmatprep.subr.mxu0 0.0
        %660 = vmatpush2.msra.mxu0 0.0
        %661 = vmatprep.subr.mxu0 0.0
        %662 = vmatpush2.msra.mxu0 0.0
        %663 = vmatprep.subr.mxu0 0.0
        %664 = vmatpush2.msra.mxu0 0.0
        %665 = vmatprep.subr.mxu0 0.0
        %666 = vmatpush2.msra.mxu0 0.0
        %667 = vmatprep.subr.mxu0 0.0
        %668 = vmatpush2.msra.mxu0 0.0
        %669 = vmatprep.subr.mxu0 0.0
        %670 = vmatpush2.msra.mxu0 0.0
        %671 = vmatprep.subr.mxu0 0.0
        %672 = vmatpush2.msra.mxu0 0.0
        %673 = vmatprep.subr.mxu0 0.0
        %674 = vmatpush2.msra.mxu0 0.0
        %675 = vmatprep.subr.mxu0 0.0
        %676 = vmatpush2.msra.mxu0 0.0
        %677 = vmatprep.subr.mxu0 0.0
        %678 = vmatpush2.msra.mxu0 0.0
        %679 = vmatprep.subr.mxu0 0.0
        %680 = vmatpush2.msra.mxu0 0.0
        %681 = vmatprep.subr.mxu0 0.0
        %682 = vmatpush2.msra.mxu0 0.0
        %683 = vmatprep.subr.mxu0 0.0
        %684 = vmatpush2.msra.mxu0 0.0
        %685 = vmatprep.mubr.f32.mxu0 0.0
        %686 = vmatmul.mubr.f32.gmra.mxu0 %v604
        %v687 = vpop.f32.mrf.mxu0
        %v688 = vadd.f32 %v573, %v687
        %v689 = vpop.f32.mrf.mxu0
        %690 = vmatprep.mubr.f32.mxu0 0.0
        %691 = vmatmul.mubr.f32.gmra.mxu0 %v618
        %v692 = vpop.f32.mrf.mxu0
        %v693 = vadd.f32 %v573, %v692
        %v694 = vpop.f32.mrf.mxu0
        %695 = vdwg.mxu0
        %vm696 = vcmask 23552
        %697 = vst.msk [vmem:[%s192] sm:$0xff] %vm696, %v688
        %698 = vst.msk [vmem:[%s192 + $0x8] sm:$0xff] %vm696, %v693
        %s699 = smul.u32 2, %s17
        %p700 = scmp.lt.s32.totalorder %s699, 3
        %s701 = scalar_select %p700, %s699, 3
        %s702 = smul.addr %s701, 8
        %s703 = scalar_lea.vmem %s3, %s702
        // Predicated region
        $region37: #{tpu_custom_call.1} parent=31 // pred_check
          %p704 = pneg %p103
        $region38: #{tpu_custom_call.1} parent=31 // pred_check_branch
          %706 = sbr.rel (%p704) target = $region40
        $region39: #{tpu_custom_call.1} parent=31 // pred_region
          %s707 = smul.u32 2, %s17
        $region40: #{tpu_custom_call.1} parent=31 // pred_fallthru
          _
      $region32: #{tpu_custom_call.1} parent=5 // pred_fallthru
        _
      %p708 = scmp.le.s32.totalorder 2, %s12
      // Predicated region
      $region41: #{tpu_custom_call.1} parent=5 // pred_check
        %p709 = pneg %p708
      $region42: #{tpu_custom_call.1} parent=5 // pred_check_branch
        %711 = sbr.rel (%p709) target = $region44
      $region43: #{tpu_custom_call.1} parent=5 // pred_region
        %s712 = ssub.s32 %s12, 2
        // Predicated region
        $region45: #{tpu_custom_call.1} parent=43 // pred_check
          %p713 = pneg %p109
        $region46: #{tpu_custom_call.1} parent=43 // pred_check_branch
          %715 = sbr.rel (%p713) target = $region48
        $region47: #{tpu_custom_call.1} parent=43 // pred_region
          %s716 = smul.u32 2, %s18
          %p717 = scmp.lt.s32.totalorder %s716, 3
          %s718 = scalar_select %p717, %s716, 3
          %s719 = smul.addr %s718, 8
          %s720 = scalar_lea.vmem %s3, %s719
        $region48: #{tpu_custom_call.1} parent=43 // pred_fallthru
          _
      $region44: #{tpu_custom_call.1} parent=5 // pred_fallthru
        _
    $region6: #{tpu_custom_call.1} parent=1 // loop_footer
      %s16 = sadd.s32 1, %s12
    $region7: #{tpu_custom_call.1} parent=1 // loop_footer_branch
      %11 = sbr.rel target = $region3
    $region8: #{tpu_custom_call.1} parent=1 // loop_exit
      _
    %721 = vsyncpa [#allocation3], 1
    %s722 = scalar_lea.sflag [#allocation3], 1
    %723 = vsyncpa %s722, 1

</llo_original>
